<compile_context>
chip_gen: v7x
topology: tpu7x:2x2x1
jax: 0.10.0
libtpu: 0.0.40
codegen_flags: <defaults>
</compile_context>

<pallas_src>
import functools

import jax
import jax.numpy as jnp
from jax.experimental import pallas as pl
from jax.experimental.pallas import tpu as pltpu


# ------------------------------ tiling helper -------------------------------

def _pick_tile(dim, preferred, align):
    """Largest align-multiple tile <= preferred, or the full dim if it is small."""
    if dim <= preferred:
        return dim
    return max(align, (preferred // align) * align)


# ----------------------------- linear kernels -------------------------------

def _linear_nobias_kernel(x_ref, w_ref, o_ref, *, compute_dtype):
    x = x_ref[...].astype(compute_dtype)
    w = w_ref[...].astype(compute_dtype)
    acc = jnp.dot(x, w, preferred_element_type=jnp.float32)
    o_ref[...] = acc.astype(o_ref.dtype)


def _linear_bias_kernel(x_ref, w_ref, b_ref, o_ref, *, compute_dtype):
    x = x_ref[...].astype(compute_dtype)
    w = w_ref[...].astype(compute_dtype)
    acc = jnp.dot(x, w, preferred_element_type=jnp.float32)
    acc = acc + b_ref[...].astype(jnp.float32)
    o_ref[...] = acc.astype(o_ref.dtype)


def pallas_linear(x2d, w, b=None, *, out_dtype=None, compute_dtype=None,
                  tm=256, tn=256):
    """x2d: (M, Cin), w: (Cin, Cout), b: (Cout,) or None -> (M, Cout).

    Tiled over M and Cout; Cin is loaded whole per tile.  Tile sizes default to
    256 (VMEM-conservative enough for v7x; MXU-friendly on v6e/v7x, 128-multiple
    for v5e).
    """
    M, Cin = x2d.shape
    Cout = w.shape[1]
    out_dtype = out_dtype or x2d.dtype
    compute_dtype = compute_dtype or x2d.dtype

    TM = _pick_tile(M, tm, 8)
    TN = _pick_tile(Cout, tn, 128)
    grid = (pl.cdiv(M, TM), pl.cdiv(Cout, TN))

    in_specs = [
        pl.BlockSpec((TM, Cin), lambda i, j: (i, 0)),
        pl.BlockSpec((Cin, TN), lambda i, j: (0, j)),
    ]
    args = [x2d, w]
    if b is None:
        kernel = functools.partial(_linear_nobias_kernel,
                                   compute_dtype=compute_dtype)
    else:
        kernel = functools.partial(_linear_bias_kernel,
                                   compute_dtype=compute_dtype)
        in_specs.append(pl.BlockSpec((1, TN), lambda i, j: (0, j)))
        args.append(b.reshape(1, Cout))

    return pl.pallas_call(
        kernel,
        out_shape=jax.ShapeDtypeStruct((M, Cout), out_dtype),
        grid=grid,
        in_specs=in_specs,
        out_specs=pl.BlockSpec((TM, TN), lambda i, j: (i, j)),
        compiler_params=pltpu.CompilerParams(
            dimension_semantics=("parallel", "parallel")),
    )(*args)


# ----------------------------- attention kernel ------------------------------

def _mhsa_kernel(qkv_ref, o_ref, *, num_heads, scale, compute_dtype):
    """One batch element per grid step.

    qkv_ref block: (1, N, 3C) laid out as [q(H*D) | k(H*D) | v(H*D)].
    o_ref   block: (1, N, C) written directly in the final (B, N, C) layout
    (head h occupies channels [h*D, (h+1)*D)), so no JAX-level transpose is
    needed afterwards.
    """
    qkv = qkv_ref[0]                       # (N, 3C)
    C = o_ref.shape[2]
    D = C // num_heads

    for h in range(num_heads):             # static unroll over heads
        qh = (qkv[:, h * D:(h + 1) * D].astype(jnp.float32) * scale)
        kh = qkv[:, C + h * D:C + (h + 1) * D]
        vh = qkv[:, 2 * C + h * D:2 * C + (h + 1) * D]

        s = jnp.dot(qh.astype(compute_dtype), kh.astype(compute_dtype).T,
                    preferred_element_type=jnp.float32)          # (N, N), f32
        m = jnp.max(s, axis=-1, keepdims=True)
        p = jnp.exp(s - m)
        p = p * pl.reciprocal(jnp.sum(p, axis=-1, keepdims=True), approx=True)

        oh = jnp.dot(p.astype(compute_dtype), vh.astype(compute_dtype),
                     preferred_element_type=jnp.float32)         # (N, D)
        o_ref[0, :, h * D:(h + 1) * D] = oh.astype(o_ref.dtype)


def pallas_mhsa(qkv, num_heads, scale, *, out_dtype, compute_dtype):
    """qkv: (B, N, 3C) -> (B, N, C) in final channel layout (head-major)."""
    B, N, C3 = qkv.shape
    C = C3 // 3
    return pl.pallas_call(
        functools.partial(_mhsa_kernel, num_heads=num_heads, scale=scale,
                          compute_dtype=compute_dtype),
        out_shape=jax.ShapeDtypeStruct((B, N, C), out_dtype),
        grid=(B,),
        in_specs=[pl.BlockSpec((1, N, 3 * C), lambda b: (b, 0, 0))],
        out_specs=pl.BlockSpec((1, N, C), lambda b: (b, 0, 0)),
        compiler_params=pltpu.CompilerParams(
            dimension_semantics=("parallel",)),
    )(qkv)


# -------------------------------- full module --------------------------------

def attention_forward(x, w_qkv, w_proj, b_proj, num_heads, *,
                      compute_dtype=None):
    """Equivalent of Attention.forward (eval mode; qkv_bias=False, dropout p=0).

    compute_dtype: dtype of MXU operands (e.g. jnp.bfloat16 on v6e/v7x);
    accumulation and softmax stay f32.  None -> use x.dtype.
    """
    B, N, C = x.shape
    D = C // num_heads
    scale = D ** (-0.5)
    cdt = compute_dtype or x.dtype

    # qkv projection (no bias).  Output kept in compute dtype to reduce the
    # inter-kernel HBM traffic when running bf16.
    qkv = pallas_linear(x.reshape(B * N, C), w_qkv,
                        out_dtype=cdt, compute_dtype=cdt)        # (B*N, 3C)
    qkv = qkv.reshape(B, N, 3 * C)     # metadata-only reshape (no HBM copy)

    # all-heads-per-batch attention, output already in (B, N, C) layout
    o = pallas_mhsa(qkv, num_heads, scale,
                    out_dtype=cdt, compute_dtype=cdt)            # (B, N, C)

    # output projection (with bias), result in the input dtype
    out = pallas_linear(o.reshape(B * N, C), w_proj, b_proj,
                        out_dtype=x.dtype, compute_dtype=cdt)    # (B*N, C)
    return out.reshape(B, N, C)


# ----------------------------- pure-JAX reference -----------------------------

def attention_reference(x, w_qkv, w_proj, b_proj, num_heads):
    B, N, C = x.shape
    H = num_heads
    D = C // H
    scale = D ** (-0.5)
    qkv = (x.reshape(B * N, C) @ w_qkv).reshape(B, N, 3, H, D).transpose(2, 0, 3, 1, 4)
    q, k, v = qkv[0], qkv[1], qkv[2]
    attn = jnp.einsum("bhnd,bhmd->bhnm", q, k) * scale
    attn = jax.nn.softmax(attn, axis=-1)
    o = jnp.einsum("bhnm,bhmd->bhnd", attn, v)
    o = o.transpose(0, 2, 1, 3).reshape(B, N, C)
    return (o.reshape(B * N, C) @ w_proj + b_proj).reshape(B, N, C)


# ------------------------------------ main ------------------------------------

if __name__ == "__main__":
    B, N, C = 2, 16, 64
    num_heads = 8

    key = jax.random.PRNGKey(0)
    kx, kqkv, kproj, kb = jax.random.split(key, 4)

    x = jax.random.normal(kx, (B, N, C), dtype=jnp.float32)
    # Deterministic parameter init (synthetic module; not loading a checkpoint).
    w_qkv = jax.random.normal(kqkv, (C, 3 * C), dtype=jnp.float32) * 0.05
    w_proj = jax.random.normal(kproj, (C, C), dtype=jnp.float32) * 0.05
    b_proj = jax.random.normal(kb, (C,), dtype=jnp.float32) * 0.05

    ref = attention_reference(x, w_qkv, w_proj, b_proj, num_heads)

    # f32 MXU operands (v5e-style), tight-ish check (approx reciprocal in softmax).
    out_f32 = jax.block_until_ready(
        attention_forward(x, w_qkv, w_proj, b_proj, num_heads,
                          compute_dtype=jnp.float32))
    assert out_f32.shape == (B, N, C)
    assert jnp.allclose(out_f32, ref, atol=1e-2, rtol=1e-2), "f32 mismatch vs reference"

    # bf16 MXU operands with f32 accumulation (v6e/v7x-style), loose check.
    out_bf16 = jax.block_until_ready(
        attention_forward(x, w_qkv, w_proj, b_proj, num_heads,
                          compute_dtype=jnp.bfloat16))
    assert out_bf16.shape == (B, N, C)
    assert jnp.allclose(out_bf16.astype(jnp.float32), ref,
                        atol=6e-2, rtol=6e-2), "bf16 mismatch vs reference"

    print("KERNEL_OK")
</pallas_src>

<mosaic_0001>
module attributes {stable_mosaic.version = 11 : i64} {
  func.func @_linear_nobias_kernel(%arg0: i32, %arg1: i32, %arg2: memref<32x64xf32, #tpu.memory_space<vmem>>, %arg3: memref<64x192xf32, #tpu.memory_space<vmem>>, %arg4: memref<32x192xf32, #tpu.memory_space<vmem>>) attributes {dimension_semantics = [#tpu.dimension_semantics<parallel>, #tpu.dimension_semantics<parallel>], iteration_bounds = array<i64: 1, 1>, scalar_prefetch = 0 : i64, scratch_operands = 0 : i64, tpu.core_type = #tpu.core_type<tc>, window_params = [{transform_indices = @transform_0, window_bounds = array<i64: 32, 64>}, {transform_indices = @transform_1, window_bounds = array<i64: 64, 192>}, {transform_indices = @transform_2, window_bounds = array<i64: 32, 192>}]} {
    %c0 = arith.constant 0 : index
    %c0_0 = arith.constant 0 : index
    %0 = vector.load %arg2[%c0, %c0_0] : memref<32x64xf32, #tpu.memory_space<vmem>>, vector<32x64xf32>
    %c0_1 = arith.constant 0 : index
    %c0_2 = arith.constant 0 : index
    %1 = vector.load %arg3[%c0_1, %c0_2] : memref<64x192xf32, #tpu.memory_space<vmem>>, vector<64x192xf32>
    %cst = arith.constant dense<0.000000e+00> : vector<32x192xf32>
    %2 = tpu.matmul %0, %1, %cst {dimension_numbers = #tpu.dot_dimension_numbers<[1], [0], [0], [1], [0, 0, 1, 1], [], []>} : vector<32x64xf32>, vector<64x192xf32>, vector<32x192xf32> -> vector<32x192xf32>
    %c0_3 = arith.constant 0 : index
    %c0_4 = arith.constant 0 : index
    %3 = vector.load %arg4[%c0_3, %c0_4] : memref<32x192xf32, #tpu.memory_space<vmem>>, vector<32x192xf32>
    tpu.vector_store %arg4[%c0_3, %c0_4], %2 {strides = array<i32>} : memref<32x192xf32, #tpu.memory_space<vmem>>, vector<32x192xf32>,
    return
  }
  func.func @transform_0(%arg0: i32, %arg1: i32) -> (i32, i32) {
    %c0_i32 = arith.constant 0 : i32
    %c0_i32_0 = arith.constant 0 : i32
    return %arg0, %c0_i32 : i32, i32
  }
  func.func @transform_1(%arg0: i32, %arg1: i32) -> (i32, i32) {
    %c0_i32 = arith.constant 0 : i32
    %c0_i32_0 = arith.constant 0 : i32
    return %c0_i32, %arg1 : i32, i32
  }
  func.func @transform_2(%arg0: i32, %arg1: i32) -> (i32, i32) {
    %c0_i32 = arith.constant 0 : i32
    return %arg0, %arg1 : i32, i32
  }
}

</mosaic_0001>

<llo_original>
// kernel: tpu_custom_call.1
$region0: #{tpu_custom_call.1}
  #allocation0 [shape = 'u32[]', space=smem, size = 0x4, offset = 0x4, fixed_abs, tag = 'smem constant byte address 0x4 - core index']
  #allocation1 [shape = 'u32[144,128]{1,0:T(1,128)}', space=vmem, size = 0x12000, scoped, tag = 'internal scratch']
  %s0 = inlined_call_operand.hbm [shape: f32[32,64], index: 0, kind: input, shape index: {}]
  %s1 = inlined_call_operand.hbm [shape: f32[64,192], index: 1, kind: input, shape index: {}]
  %s2 = inlined_call_operand.hbm [shape: f32[32,192], index: 2, kind: output, shape index: {}]
  %s3 = sld [smem:[#allocation0]]
  $region26: #{tpu_custom_call.1} parent=0
    _
  %s5 = ssub.s32 1, %s3
  %s6 = scalar_select 0, %s5, %s3
  $region1: #{tpu_custom_call.1} parent=0
    #allocation2 [shape = 'u8[16384]{0}', space=vmem, size = 0x4000, scoped, tag = 'input window, operand 0, single buffered']
    #allocation3 [shape = 's32[1]{0}', space=sflag, size = 0x4, scoped, tag = 'scoped memory for tpu_custom_call.1']
    #allocation4 [shape = 's32[1]{0}', space=sflag, size = 0x4, scoped, tag = 'scoped memory for tpu_custom_call.1']
    #allocation5 [shape = 'u8[65536]{0}', space=vmem, size = 0x10000, scoped, tag = 'input window, operand 1, single buffered']
    #allocation6 [shape = 's32[1]{0}', space=sflag, size = 0x4, scoped, tag = 'scoped memory for tpu_custom_call.1']
    #allocation7 [shape = 'u8[32768]{0}', space=vmem, size = 0x8000, scoped, tag = 'output window, operand 0, single buffered']
    %7 = vsyncpa [#allocation3], 0
    %8 = vsyncpa [#allocation6], 0
    %9 = vsyncpa [#allocation4], 0
    // Predicated region
    $region2: #{tpu_custom_call.1} parent=1 // pred_check
      _
    $region3: #{tpu_custom_call.1} parent=1 // pred_check_branch
      %11 = sbr.rel (0) target = $region5
    $region4: #{tpu_custom_call.1} parent=1 // pred_region
      %s13 = ssub.s32 512, 512
      %14 = vsyncadd [#allocation3], %s13
      %s15 = sshll.u32 [#allocation2], 4
      %s16 = int_to_ptr.vmem [resolvable:$true] %s15
      %21 = dma.hbm_to_vmem [thread:$0]  %s0, 512, %s16, [#allocation3], 128, 128, 8
    $region5: #{tpu_custom_call.1} parent=1 // pred_fallthru
      _
    // Predicated region
    $region6: #{tpu_custom_call.1} parent=1 // pred_check
      _
    $region7: #{tpu_custom_call.1} parent=1 // pred_check_branch
      %23 = sbr.rel (0) target = $region9
    $region8: #{tpu_custom_call.1} parent=1 // pred_region
      %s25 = ssub.s32 2048, 2048
      %26 = vsyncadd [#allocation6], %s25
      %s27 = sshll.u32 [#allocation5], 4
      %s28 = int_to_ptr.vmem [resolvable:$true] %s27
      %33 = dma.hbm_to_vmem [thread:$0]  %s1, 2048, %s28, [#allocation6], 256, 256, 16
    $region9: #{tpu_custom_call.1} parent=1 // pred_fallthru
      _
    // Predicated region
    $region10: #{tpu_custom_call.1} parent=1 // pred_check
      _
    $region11: #{tpu_custom_call.1} parent=1 // pred_check_branch
      %35 = sbr.rel (0) target = $region13
    $region12: #{tpu_custom_call.1} parent=1 // pred_region
      %36 = dma.done [#allocation3], 512
    $region13: #{tpu_custom_call.1} parent=1 // pred_fallthru
      _
    // Predicated region
    $region14: #{tpu_custom_call.1} parent=1 // pred_check
      _
    $region15: #{tpu_custom_call.1} parent=1 // pred_check_branch
      %38 = sbr.rel (0) target = $region17
    $region16: #{tpu_custom_call.1} parent=1 // pred_region
      %39 = dma.done [#allocation6], 2048
    $region17: #{tpu_custom_call.1} parent=1 // pred_fallthru
      _
    %v40 = vld [vmem:[#allocation2] sm:$0xff]
    %v41 = vld [vmem:[#allocation2 + $0x8] sm:$0xff]
    %v42 = vld [vmem:[#allocation2 + $0x10] sm:$0xff]
    %v43 = vld [vmem:[#allocation2 + $0x18] sm:$0xff]
    %v44 = vld [vmem:[#allocation5] sm:$0xff]
    %v45 = vld [vmem:[#allocation5 + $0x8] sm:$0xff]
    %v46 = vld [vmem:[#allocation5 + $0x10] sm:$0xff]
    %v47 = vld [vmem:[#allocation5 + $0x18] sm:$0xff]
    %v48 = vld [vmem:[#allocation5 + $0x20] sm:$0xff]
    %v49 = vld [vmem:[#allocation5 + $0x28] sm:$0xff]
    %v50 = vld [vmem:[#allocation5 + $0x30] sm:$0xff]
    %v51 = vld [vmem:[#allocation5 + $0x38] sm:$0xff]
    %v52 = vld [vmem:[#allocation5 + $0x40] sm:$0xff]
    %v53 = vld [vmem:[#allocation5 + $0x48] sm:$0xff]
    %v54 = vld [vmem:[#allocation5 + $0x50] sm:$0xff]
    %v55 = vld [vmem:[#allocation5 + $0x58] sm:$0xff]
    %v56 = vld [vmem:[#allocation5 + $0x60] sm:$0xff]
    %v57 = vld [vmem:[#allocation5 + $0x68] sm:$0xff]
    %v58 = vld [vmem:[#allocation5 + $0x70] sm:$0xff]
    %v59 = vld [vmem:[#allocation5 + $0x78] sm:$0xff]
    %vm60 = vcmask 523264
    %v62 = vsel %vm60, %v40, 0
    %v65 = vsel %vm60, %v41, 0
    %v68 = vsel %vm60, %v42, 0
    %v71 = vsel %vm60, %v43, 0
    %73 = vmatprep.subr.mxu0 %v45
    %74 = vmatpush1.msra.mxu0 %v44
    %75 = vmatprep.subr.mxu0 %v47
    %76 = vmatpush1.msra.mxu0 %v46
    %77 = vmatprep.subr.mxu0 %v49
    %78 = vmatpush1.msra.mxu0 %v48
    %79 = vmatprep.subr.mxu0 %v51
    %80 = vmatpush1.msra.mxu0 %v50
    %81 = vmatprep.subr.mxu0 %v53
    %82 = vmatpush1.msra.mxu0 %v52
    %83 = vmatprep.subr.mxu0 %v55
    %84 = vmatpush1.msra.mxu0 %v54
    %85 = vmatprep.subr.mxu0 %v57
    %86 = vmatpush1.msra.mxu0 %v56
    %87 = vmatprep.subr.mxu0 %v59
    %88 = vmatpush1.msra.mxu0 %v58
    %89 = vmatprep.subr.mxu0 0.0
    %90 = vmatpush1.msra.mxu0 0.0
    %91 = vmatprep.subr.mxu0 0.0
    %92 = vmatpush1.msra.mxu0 0.0
    %93 = vmatprep.subr.mxu0 0.0
    %94 = vmatpush1.msra.mxu0 0.0
    %95 = vmatprep.subr.mxu0 0.0
    %96 = vmatpush1.msra.mxu0 0.0
    %97 = vmatprep.subr.mxu0 0.0
    %98 = vmatpush1.msra.mxu0 0.0
    %99 = vmatprep.subr.mxu0 0.0
    %100 = vmatpush1.msra.mxu0 0.0
    %101 = vmatprep.subr.mxu0 0.0
    %102 = vmatpush1.msra.mxu0 0.0
    %103 = vmatprep.subr.mxu0 0.0
    %104 = vmatpush1.msra.mxu0 0.0
    %105 = vmatprep.subr.mxu0 0.0
    %106 = vmatpush1.msra.mxu0 0.0
    %107 = vmatprep.subr.mxu0 0.0
    %108 = vmatpush1.msra.mxu0 0.0
    %109 = vmatprep.subr.mxu0 0.0
    %110 = vmatpush1.msra.mxu0 0.0
    %111 = vmatprep.subr.mxu0 0.0
    %112 = vmatpush1.msra.mxu0 0.0
    %113 = vmatprep.subr.mxu0 0.0
    %114 = vmatpush1.msra.mxu0 0.0
    %115 = vmatprep.subr.mxu0 0.0
    %116 = vmatpush1.msra.mxu0 0.0
    %117 = vmatprep.subr.mxu0 0.0
    %118 = vmatpush1.msra.mxu0 0.0
    %119 = vmatprep.subr.mxu0 0.0
    %120 = vmatpush1.msra.mxu0 0.0
    %121 = vmatprep.subr.mxu0 0.0
    %122 = vmatpush1.msra.mxu0 0.0
    %123 = vmatprep.subr.mxu0 0.0
    %124 = vmatpush1.msra.mxu0 0.0
    %125 = vmatprep.subr.mxu0 0.0
    %126 = vmatpush1.msra.mxu0 0.0
    %127 = vmatprep.subr.mxu0 0.0
    %128 = vmatpush1.msra.mxu0 0.0
    %129 = vmatprep.subr.mxu0 0.0
    %130 = vmatpush1.msra.mxu0 0.0
    %131 = vmatprep.subr.mxu0 0.0
    %132 = vmatpush1.msra.mxu0 0.0
    %133 = vmatprep.subr.mxu0 0.0
    %134 = vmatpush1.msra.mxu0 0.0
    %135 = vmatprep.subr.mxu0 0.0
    %136 = vmatpush1.msra.mxu0 0.0
    %137 = vmatprep.mubr.f32.mxu0 0.0
    %138 = vmatmul.mubr.f32.gmra.mrb[0].mxu0 %v62
    %v139 = vpop.f32.mrb[0].mxu0
    %v140 = vadd.f32 0.0, %v139
    %v141 = vpop.f32.mrb[0].mxu0
    %v142 = vadd.f32 0.0, %v141
    %143 = vmatprep.mubr.f32.mxu0 0.0
    %144 = vmatmul.mubr.f32.gmra.mrb[0].mxu0 %v65
    %v145 = vpop.f32.mrb[0].mxu0
    %v146 = vadd.f32 0.0, %v145
    %v147 = vpop.f32.mrb[0].mxu0
    %v148 = vadd.f32 0.0, %v147
    %149 = vmatprep.mubr.f32.mxu0 0.0
    %150 = vmatmul.mubr.f32.gmra.mrb[0].mxu0 %v68
    %v151 = vpop.f32.mrb[0].mxu0
    %v152 = vadd.f32 0.0, %v151
    %v153 = vpop.f32.mrb[0].mxu0
    %v154 = vadd.f32 0.0, %v153
    %155 = vmatprep.mubr.f32.mxu0 0.0
    %156 = vmatmul.mubr.f32.gmra.mrb[0].mxu0 %v71
    %v157 = vpop.f32.mrb[0].mxu0
    %v158 = vadd.f32 0.0, %v157
    %v159 = vpop.f32.mrb[0].mxu0
    %v160 = vadd.f32 0.0, %v159
    %161 = vdwg.mxu0
    %162 = vst [vmem:[#allocation7] sm:$0xff] %v140
    %163 = vst.msk [vmem:[#allocation7 + $0x8] sm:$0xff] %vm60, %v142
    %164 = vst [vmem:[#allocation7 + $0x10] sm:$0xff] %v146
    %165 = vst.msk [vmem:[#allocation7 + $0x18] sm:$0xff] %vm60, %v148
    %166 = vst [vmem:[#allocation7 + $0x20] sm:$0xff] %v152
    %167 = vst.msk [vmem:[#allocation7 + $0x28] sm:$0xff] %vm60, %v154
    %168 = vst [vmem:[#allocation7 + $0x30] sm:$0xff] %v158
    %169 = vst.msk [vmem:[#allocation7 + $0x38] sm:$0xff] %vm60, %v160
    // Predicated region
    $region18: #{tpu_custom_call.1} parent=1 // pred_check
      _
    $region19: #{tpu_custom_call.1} parent=1 // pred_check_branch
      %171 = sbr.rel (0) target = $region21
    $region20: #{tpu_custom_call.1} parent=1 // pred_region
      %s173 = ssub.s32 1024, 1024
      %174 = vsyncadd [#allocation4], %s173
      %s175 = sshll.u32 [#allocation7], 4
      %s176 = int_to_ptr.vmem [resolvable:$true] %s175
      %181 = dma.vmem_to_hbm [thread:$0]  %s176, 1024, %s2, [#allocation4], 256, 256, 16
    $region21: #{tpu_custom_call.1} parent=1 // pred_fallthru
      _
    // Predicated region
    $region22: #{tpu_custom_call.1} parent=1 // pred_check
      _
    $region23: #{tpu_custom_call.1} parent=1 // pred_check_branch
      %183 = sbr.rel (0) target = $region25
    $region24: #{tpu_custom_call.1} parent=1 // pred_region
      %184 = dma.done [#allocation4], 1024
    $region25: #{tpu_custom_call.1} parent=1 // pred_fallthru
      _
    %185 = vsyncpa [#allocation3], 1
    %186 = vsyncpa [#allocation6], 1
    %187 = vsyncpa [#allocation4], 1

</llo_original>
